<compile_context>
chip_gen: v7x
topology: tpu7x:2x2x1
jax: 0.10.0
libtpu: 0.0.40
codegen_flags: <defaults>
</compile_context>

<pallas_src>
import functools
import math

import jax
import jax.numpy as jnp
from jax.experimental import pallas as pl
from jax.experimental.pallas import tpu as pltpu


def _round_up(x, m):
    return -(-x // m) * m


def _entropy_term(ls, v):
    """(1-ls)*log(1-ls) + ls*log(ls/(V-1)) with xlogy conventions at ls in {0, 1}."""
    e = 0.0
    if ls < 1.0:
        e += (1.0 - ls) * math.log(1.0 - ls)
    if ls > 0.0:
        e += ls * math.log(ls / (v - 1))
    return e


def _vmem_capacity_bytes():
    try:
        info = pltpu.get_tpu_info()
        cap = getattr(info, "vmem_capacity_bytes", None)
        if cap:
            return int(cap)
    except Exception:
        pass
    return 64 * 1024 * 1024  # conservative fallback (v7x per-TC VMEM)


def _bytes_per_row(v, itemsize):
    """Resident VMEM bytes per logits row for one grid step.

    2x double-buffered logits block + ~2 full-tile f32 temporaries (bf16->f32 cast,
    exp(xm)) + double-buffered lane-padded target (i32) and per-row-loss (f32) blocks.
    """
    v_pad = _round_up(v, 128)
    return 2 * v_pad * itemsize + 2 * v_pad * 4 + 2 * 128 * 4 + 2 * 128 * 4


def _choose_tile_n(n, v, itemsize, budget_bytes, sub):
    """Largest sublane-aligned row tile fitting the VMEM budget, with >=2 grid steps
    whenever n allows (so both v7x TensorCores get work)."""
    cap = max(sub, (budget_bytes // _bytes_per_row(v, itemsize) // sub) * sub)
    want = _round_up(max(1, -(-n // 2)), sub)     # ~ceil(n/2), sublane-rounded
    return max(sub, min(cap, want))


def _label_smoothing_kernel(t_ref, x_ref, out_ref, *, label_smoothing,
                            unreliable_label, ignore_index, ent_smooth):
    x = x_ref[...].astype(jnp.float32)            # (TN, V) logits (tail rows may be garbage)
    t = t_ref[...]                                # (TN, 1) int32 targets (tail = ignore_index)
    tn, v = x.shape

    # --- row-wise logsumexp; xm is reused by every reduction (single tile pass) ---
    m = jnp.max(x, axis=-1, keepdims=True)
    xm = x - m                                    # (TN, V), <= 0 for real rows
    sum_exp = jnp.sum(jnp.exp(xm), axis=-1, keepdims=True)
    log_sum_exp = jnp.log(sum_exp)                # lse = log_sum_exp + m

    # --- x[t] - m via one-hot select + lane reduce (no gather primitive needed) ---
    col = jax.lax.broadcasted_iota(jnp.int32, (tn, v), 1)
    xm_t = jnp.sum(jnp.where(col == t, xm, jnp.float32(0.0)),
                   axis=-1, keepdims=True)        # (TN, 1)
    logp_t = xm_t - log_sum_exp                   # = x[t] - lse

    if label_smoothing == 0.0:
        # Pure cross-entropy path (also covers unreliable_label-set case with ls == 0).
        loss_rows = -logp_t
    else:
        # sum_j logp_j = sum_j (x_j - lse) = sum(xm) - V * log(sum_exp)
        sum_logp = (jnp.sum(xm, axis=-1, keepdims=True)
                    - jnp.float32(v) * log_sum_exp)
        if unreliable_label is None:
            one_m_ls = jnp.float32(1.0 - label_smoothing)
            sv = jnp.float32(label_smoothing / (v - 1))
            ent = jnp.float32(ent_smooth)
        else:
            is_u = t == unreliable_label          # (TN, 1) bool
            one_m_ls = jnp.where(is_u, jnp.float32(1.0 - label_smoothing),
                                 jnp.float32(1.0))
            sv = jnp.where(is_u, jnp.float32(label_smoothing / (v - 1)),
                           jnp.float32(0.0))
            ent = jnp.where(is_u, jnp.float32(ent_smooth), jnp.float32(0.0))
        loss_rows = ent - (one_m_ls * logp_t + sv * (sum_logp - logp_t))

    # Padded / OOB tail rows have target == ignore_index -> zeroed here (jnp.where is a
    # select, so NaN/Inf from garbage logits never leaks through).
    valid = t != ignore_index
    out_ref[...] = jnp.where(valid, loss_rows, jnp.float32(0.0))


def label_smoothing_loss(logits, target, *, label_smoothing=0.0,
                         unreliable_label=None, ignore_index=-100,
                         tile_n=None, vmem_block_budget_bytes=None):
    """logits: [N, V] float (f32 or bf16); target: [N] int. Returns scalar f32 loss.

    V must be the exact vocab size (no caller-side vocab padding). If every target
    equals ignore_index the result is NaN (0/0), matching the reference batchmean.
    Feed bf16 logits where possible: the kernel DMAs the input dtype and casts in VMEM.
    """
    n, v = logits.shape
    if label_smoothing > 0.0:
        assert v >= 2, "label smoothing needs vocab_size >= 2"
    itemsize = jnp.dtype(logits.dtype).itemsize
    sub = max(8, 32 // itemsize)                 # sublane multiple: f32->8, bf16->16, int8->32

    vmem_cap = _vmem_capacity_bytes()
    if vmem_block_budget_bytes is None:
        vmem_block_budget_bytes = vmem_cap // 3  # generation-aware (~21 MiB v7x, ~42 MiB v5e/v6e)

    if sub * _bytes_per_row(v, itemsize) + (8 << 20) > vmem_cap:
        # TODO(synk): tile over V with a cross-block logsumexp accumulator for vocabs
        # too large to hold even a minimum row-tile in VMEM.
        raise ValueError("vocab dimension too large for a single-pass row-tile kernel "
                         "on this TPU generation")

    if tile_n is None:
        tile_n = _choose_tile_n(n, v, itemsize, vmem_block_budget_bytes, sub)
    assert tile_n % sub == 0, (tile_n, sub)

    n_tiles = -(-n // tile_n)
    n_pad = n_tiles * tile_n

    # Only the (tiny, 4 B/row) target vector is padded; the logits stay untouched in
    # HBM and the ragged last block is read partially out-of-bounds by Pallas.
    t = target.astype(jnp.int32)
    if n_pad != n:
        t = jnp.pad(t, (0, n_pad - n), constant_values=int(ignore_index))
    t2 = t.reshape(n_pad, 1)

    ent_smooth = _entropy_term(float(label_smoothing), v)

    kernel = functools.partial(
        _label_smoothing_kernel,
        label_smoothing=float(label_smoothing),
        unreliable_label=(None if unreliable_label is None else int(unreliable_label)),
        ignore_index=int(ignore_index),
        ent_smooth=ent_smooth,
    )

    need = tile_n * _bytes_per_row(v, itemsize)
    vmem_limit = int(min(need + 8 * 1024 * 1024, vmem_cap))   # headroom, <= physical

    per_row = pl.pallas_call(
        kernel,
        out_shape=jax.ShapeDtypeStruct((n_pad, 1), jnp.float32),
        grid_spec=pltpu.PrefetchScalarGridSpec(
            num_scalar_prefetch=0,
            grid=(n_tiles,),
            in_specs=[
                pl.BlockSpec((tile_n, 1), lambda i: (i, 0)),   # targets (padded)
                pl.BlockSpec((tile_n, v), lambda i: (i, 0)),   # logits (un-padded, ragged tail)
            ],
            out_specs=pl.BlockSpec((tile_n, 1), lambda i: (i, 0)),
        ),
        compiler_params=pltpu.CompilerParams(
            dimension_semantics=("parallel",),   # independent tiles -> v7x dual-core
            vmem_limit_bytes=vmem_limit),
    )(t2, logits)

    cnt = jnp.sum((target != ignore_index).astype(jnp.float32))
    return jnp.sum(per_row[:, 0]) / cnt


def _reference(logits, target, label_smoothing, unreliable_label, ignore_index):
    """Pure-JAX (eager) mirror of the PyTorch forward, for verification."""
    mask = target != ignore_index
    x = logits[mask].astype(jnp.float32)
    t = target[mask]
    logp = jax.nn.log_softmax(x, axis=1)
    n, v = x.shape

    def smooth(ls):
        p = jnp.full((n, v), ls / (v - 1), jnp.float32)
        return p.at[jnp.arange(n), t].set(1.0 - ls)

    if unreliable_label is not None:
        sp, hp = smooth(label_smoothing), smooth(0.0)
        um = (t == unreliable_label).astype(jnp.float32)[:, None]
        p = sp * um + hp * (1.0 - um)
    else:
        p = smooth(label_smoothing)

    safe_p = jnp.where(p > 0, p, 1.0)
    kl = jnp.where(p > 0, p * (jnp.log(safe_p) - logp), 0.0)
    return jnp.sum(kl) / n


if __name__ == "__main__":
    key = jax.random.PRNGKey(0)
    k1, k2 = jax.random.split(key)

    N, V = 16, 32
    logits = jax.random.normal(k1, (N, V), dtype=jnp.float32)
    target = jax.random.randint(k2, (N,), 0, V, dtype=jnp.int32)
    # a couple of ignored rows + make sure the unreliable label appears
    target = target.at[3].set(-100).at[11].set(-100).at[5].set(7).at[9].set(7)

    label_smoothing = 0.1
    unreliable_label = 7
    ignore_index = -100

    # 1) unreliable-label path
    loss = jax.block_until_ready(label_smoothing_loss(
        logits, target, label_smoothing=label_smoothing,
        unreliable_label=unreliable_label, ignore_index=ignore_index))
    ref = _reference(logits, target, label_smoothing, unreliable_label, ignore_index)
    assert jnp.allclose(loss, ref, rtol=1e-5, atol=1e-5), (loss, ref)

    # 2) plain label-smoothing path
    loss2 = jax.block_until_ready(label_smoothing_loss(
        logits, target, label_smoothing=label_smoothing,
        unreliable_label=None, ignore_index=ignore_index))
    ref2 = _reference(logits, target, label_smoothing, None, ignore_index)
    assert jnp.allclose(loss2, ref2, rtol=1e-5, atol=1e-5), (loss2, ref2)

    # 3) cross-entropy shortcut (label_smoothing == 0)
    loss3 = jax.block_until_ready(label_smoothing_loss(
        logits, target, label_smoothing=0.0,
        unreliable_label=None, ignore_index=ignore_index))
    ref3 = _reference(logits, target, 0.0, None, ignore_index)
    assert jnp.allclose(loss3, ref3, rtol=1e-5, atol=1e-5), (loss3, ref3)

    # 4) non-multiple-of-tile N exercises the ragged-tail path (no logits padding)
    loss4 = jax.block_until_ready(label_smoothing_loss(
        logits[:13], target[:13], label_smoothing=label_smoothing,
        unreliable_label=unreliable_label, ignore_index=ignore_index))
    ref4 = _reference(logits[:13], target[:13], label_smoothing,
                      unreliable_label, ignore_index)
    assert jnp.allclose(loss4, ref4, rtol=1e-5, atol=1e-5), (loss4, ref4)

    # 5) bf16 logits exercise the dtype-aware (16-row) sublane rounding
    logits_bf16 = logits.astype(jnp.bfloat16)
    loss5 = jax.block_until_ready(label_smoothing_loss(
        logits_bf16, target, label_smoothing=label_smoothing,
        unreliable_label=unreliable_label, ignore_index=ignore_index))
    ref5 = _reference(logits_bf16.astype(jnp.float32), target, label_smoothing,
                      unreliable_label, ignore_index)
    assert jnp.allclose(loss5, ref5, rtol=1e-4, atol=1e-4), (loss5, ref5)

    print("KERNEL_OK")
</pallas_src>

<mosaic_0001>
module attributes {stable_mosaic.version = 11 : i64} {
  func.func @_label_smoothing_kernel(%arg0: i32, %arg1: memref<8x1xi32, #tpu.memory_space<vmem>>, %arg2: memref<8x32xf32, #tpu.memory_space<vmem>>, %arg3: memref<8x1xf32, #tpu.memory_space<vmem>>) attributes {dimension_semantics = [#tpu.dimension_semantics<parallel>], iteration_bounds = array<i64: 2>, scalar_prefetch = 0 : i64, scratch_operands = 0 : i64, tpu.core_type = #tpu.core_type<tc>, window_params = [{transform_indices = @transform_0, window_bounds = array<i64: 8, 1>}, {transform_indices = @transform_1, window_bounds = array<i64: 8, 32>}, {transform_indices = @transform_2, window_bounds = array<i64: 8, 1>}]} {
    %c0 = arith.constant 0 : index
    %c0_0 = arith.constant 0 : index
    %0 = vector.load %arg2[%c0, %c0_0] : memref<8x32xf32, #tpu.memory_space<vmem>>, vector<8x32xf32>
    %c0_1 = arith.constant 0 : index
    %c0_2 = arith.constant 0 : index
    %1 = vector.load %arg1[%c0_1, %c0_2] : memref<8x1xi32, #tpu.memory_space<vmem>>, vector<8x1xi32>
    %cst = arith.constant dense<0xFF800000> : vector<8xf32>
    %2 = vector.multi_reduction <maximumf>, %0, %cst [1] : vector<8x32xf32> to vector<8xf32>
    %3 = vector.shape_cast %2 : vector<8xf32> to vector<8x1xf32>
    %4 = vector.broadcast %3 : vector<8x1xf32> to vector<8x32xf32>
    %5 = arith.subf %0, %4 : vector<8x32xf32>
    %6 = math.exp %5 : vector<8x32xf32>
    %cst_3 = arith.constant dense<0.000000e+00> : vector<8xf32>
    %7 = vector.multi_reduction <add>, %6, %cst_3 [1] : vector<8x32xf32> to vector<8xf32>
    %8 = vector.shape_cast %7 : vector<8xf32> to vector<8x1xf32>
    %9 = math.log %8 : vector<8x1xf32>
    %10 = tpu.iota {dimensions = array<i32: 1>} : vector<8x32xi32>
    %11 = vector.broadcast %1 : vector<8x1xi32> to vector<8x32xi32>
    %12 = arith.cmpi eq, %10, %11 : vector<8x32xi32>
    %cst_4 = arith.constant 0.000000e+00 : f32
    %13 = vector.broadcast %cst_4 : f32 to vector<8x32xf32>
    %14 = arith.select %12, %5, %13 : vector<8x32xi1>, vector<8x32xf32>
    %cst_5 = arith.constant dense<0.000000e+00> : vector<8xf32>
    %15 = vector.multi_reduction <add>, %14, %cst_5 [1] : vector<8x32xf32> to vector<8xf32>
    %16 = vector.shape_cast %15 : vector<8xf32> to vector<8x1xf32>
    %17 = arith.subf %16, %9 : vector<8x1xf32>
    %cst_6 = arith.constant dense<0.000000e+00> : vector<8xf32>
    %18 = vector.multi_reduction <add>, %5, %cst_6 [1] : vector<8x32xf32> to vector<8xf32>
    %19 = vector.shape_cast %18 : vector<8xf32> to vector<8x1xf32>
    %cst_7 = arith.constant 3.200000e+01 : f32
    %20 = vector.broadcast %cst_7 : f32 to vector<8x1xf32>
    %21 = arith.mulf %20, %9 : vector<8x1xf32>
    %22 = arith.subf %19, %21 : vector<8x1xf32>
    %c7_i32 = arith.constant 7 : i32
    %23 = vector.broadcast %c7_i32 : i32 to vector<8x1xi32>
    %24 = arith.cmpi eq, %1, %23 : vector<8x1xi32>
    %cst_8 = arith.constant 0.899999976 : f32
    %cst_9 = arith.constant 1.000000e+00 : f32
    %25 = vector.broadcast %cst_8 : f32 to vector<8x1xf32>
    %26 = vector.broadcast %cst_9 : f32 to vector<8x1xf32>
    %27 = arith.select %24, %25, %26 : vector<8x1xi1>, vector<8x1xf32>
    %cst_10 = arith.constant 0.0032258064 : f32
    %cst_11 = arith.constant 0.000000e+00 : f32
    %28 = vector.broadcast %cst_10 : f32 to vector<8x1xf32>
    %29 = vector.broadcast %cst_11 : f32 to vector<8x1xf32>
    %30 = arith.select %24, %28, %29 : vector<8x1xi1>, vector<8x1xf32>
    %cst_12 = arith.constant -0.668481708 : f32
    %cst_13 = arith.constant 0.000000e+00 : f32
    %31 = vector.broadcast %cst_12 : f32 to vector<8x1xf32>
    %32 = vector.broadcast %cst_13 : f32 to vector<8x1xf32>
    %33 = arith.select %24, %31, %32 : vector<8x1xi1>, vector<8x1xf32>
    %34 = arith.mulf %27, %17 : vector<8x1xf32>
    %35 = arith.subf %22, %17 : vector<8x1xf32>
    %36 = arith.mulf %30, %35 : vector<8x1xf32>
    %37 = arith.addf %34, %36 : vector<8x1xf32>
    %38 = arith.subf %33, %37 : vector<8x1xf32>
    %c-100_i32 = arith.constant -100 : i32
    %39 = vector.broadcast %c-100_i32 : i32 to vector<8x1xi32>
    %40 = arith.cmpi ne, %1, %39 : vector<8x1xi32>
    %cst_14 = arith.constant 0.000000e+00 : f32
    %41 = vector.broadcast %cst_14 : f32 to vector<8x1xf32>
    %42 = arith.select %40, %38, %41 : vector<8x1xi1>, vector<8x1xf32>
    %c0_15 = arith.constant 0 : index
    %c0_16 = arith.constant 0 : index
    %43 = vector.load %arg3[%c0_15, %c0_16] : memref<8x1xf32, #tpu.memory_space<vmem>>, vector<8x1xf32>
    tpu.vector_store %arg3[%c0_15, %c0_16], %42 {strides = array<i32>} : memref<8x1xf32, #tpu.memory_space<vmem>>, vector<8x1xf32>,
    return
  }
  func.func @transform_0(%arg0: i32) -> (i32, i32) {
    %c0_i32 = arith.constant 0 : i32
    %c0_i32_0 = arith.constant 0 : i32
    return %arg0, %c0_i32 : i32, i32
  }
  func.func @transform_1(%arg0: i32) -> (i32, i32) {
    %c0_i32 = arith.constant 0 : i32
    %c0_i32_0 = arith.constant 0 : i32
    return %arg0, %c0_i32 : i32, i32
  }
  func.func @transform_2(%arg0: i32) -> (i32, i32) {
    %c0_i32 = arith.constant 0 : i32
    %c0_i32_0 = arith.constant 0 : i32
    return %arg0, %c0_i32 : i32, i32
  }
}

</mosaic_0001>

<llo_original>
// kernel: tpu_custom_call.1
$region0: #{tpu_custom_call.1}
  #allocation0 [shape = 'u32[]', space=smem, size = 0x4, offset = 0x4, fixed_abs, tag = 'smem constant byte address 0x4 - core index']
  #allocation1 [shape = 'u32[144,128]{1,0:T(1,128)}', space=vmem, size = 0x12000, scoped, tag = 'internal scratch']
  %s0 = inlined_call_operand.vmem [shape: s32[16,1], index: 0, kind: input, shape index: {}]
  %s1 = inlined_call_operand.vmem [shape: f32[16,32], index: 1, kind: input, shape index: {}]
  %s2 = inlined_call_operand.vmem [shape: f32[16,1], index: 2, kind: output, shape index: {}]
  %s3 = sld [smem:[#allocation0]]
  $region41: #{tpu_custom_call.1} parent=0
    _
  %s5 = ssub.s32 1, %s3
  %s6 = scalar_select 0, %s5, %s3
  loop: start=0, step=1, limit=4
  $region2: #{tpu_custom_call.1} parent=0 // loop_pre_header
    _
  $region3: #{tpu_custom_call.1} parent=0 // loop_header
    %s8 = sphi 0, %s12
    %p9 = scmp.ge.s32.totalorder %s8, 4
    %s18 = sphi 0, %s20
    %s21 = sphi 0, %s18
    %s22 = sphi 0, %s21
    %s38 = sphi 0, %s22
    %s44 = sphi 0, %s46
    %s47 = sphi 0, %s44
    %s48 = sphi 0, %s47
    %s64 = sphi 0, %s48
    %s70 = sphi 0, %s72
    %s73 = sphi 0, %s70
    %s74 = sphi 0, %s73
    %s90 = sphi 0, %s74
  $region4: #{tpu_custom_call.1} parent=0 // loop_header_branch
    %11 = sbr.rel (%p9) target = $region8
  $region5: #{tpu_custom_call.1} parent=0 // loop_body
    %s13 = ssub.s32 %s8, 1
    %s14 = ssub.s32 %s8, 2
    %s15 = sadd.s32 %s8, 1
    %s16 = ssub.s32 %s8, %s15
    %p17 = scmp.eq.s32.totalorder %s16, 0
    %s19 = sadd.s32 %s18, 1
    %s20 = scalar_select %p17, %s18, %s19
    %p23 = pneg %p17
    %p24 = scmp.eq.s32.totalorder %s8, 1
    %p25 = por %p23, %p24
    %p26 = scmp.ne.s32.totalorder %s18, %s21
    %p27 = scmp.eq.s32.totalorder %s8, 0
    %p28 = por %p26, %p27
    %p29 = scmp.ne.s32.totalorder %s18, %s21
    %p30 = scmp.eq.s32.totalorder %s13, 1
    %p31 = por %p29, %p30
    %p32 = scmp.ne.s32.totalorder %s21, %s22
    %p33 = scmp.eq.s32.totalorder %s13, 0
    %p34 = por %p32, %p33
    %p35 = scmp.ne.s32.totalorder %s21, %s22
    %p36 = scmp.eq.s32.totalorder %s14, 1
    %p37 = por %p35, %p36
    %p39 = scmp.ne.s32.totalorder %s22, %s38
    %p40 = scmp.eq.s32.totalorder %s14, 0
    %p41 = por %p39, %p40
    %s42 = ssub.s32 %s8, %s15
    %p43 = scmp.eq.s32.totalorder %s42, 0
    %s45 = sadd.s32 %s44, 1
    %s46 = scalar_select %p43, %s44, %s45
    %p49 = pneg %p43
    %p50 = scmp.eq.s32.totalorder %s8, 1
    %p51 = por %p49, %p50
    %p52 = scmp.ne.s32.totalorder %s44, %s47
    %p53 = scmp.eq.s32.totalorder %s8, 0
    %p54 = por %p52, %p53
    %p55 = scmp.ne.s32.totalorder %s44, %s47
    %p56 = scmp.eq.s32.totalorder %s13, 1
    %p57 = por %p55, %p56
    %p58 = scmp.ne.s32.totalorder %s47, %s48
    %p59 = scmp.eq.s32.totalorder %s13, 0
    %p60 = por %p58, %p59
    %p61 = scmp.ne.s32.totalorder %s47, %s48
    %p62 = scmp.eq.s32.totalorder %s14, 1
    %p63 = por %p61, %p62
    %p65 = scmp.ne.s32.totalorder %s48, %s64
    %p66 = scmp.eq.s32.totalorder %s14, 0
    %p67 = por %p65, %p66
    %s68 = ssub.s32 %s8, %s15
    %p69 = scmp.eq.s32.totalorder %s68, 0
    %s71 = sadd.s32 %s70, 1
    %s72 = scalar_select %p69, %s70, %s71
    %p75 = pneg %p69
    %p76 = scmp.eq.s32.totalorder %s8, 1
    %p77 = por %p75, %p76
    %p78 = scmp.ne.s32.totalorder %s70, %s73
    %p79 = scmp.eq.s32.totalorder %s8, 0
    %p80 = por %p78, %p79
    %p81 = scmp.ne.s32.totalorder %s70, %s73
    %p82 = scmp.eq.s32.totalorder %s13, 1
    %p83 = por %p81, %p82
    %p84 = scmp.ne.s32.totalorder %s73, %s74
    %p85 = scmp.eq.s32.totalorder %s13, 0
    %p86 = por %p84, %p85
    %p87 = scmp.ne.s32.totalorder %s73, %s74
    %p88 = scmp.eq.s32.totalorder %s14, 1
    %p89 = por %p87, %p88
    %p91 = scmp.ne.s32.totalorder %s74, %s90
    %p92 = scmp.eq.s32.totalorder %s14, 0
    %p93 = por %p91, %p92
    %p94 = scmp.le.s32.totalorder 1, %s8
    %p95 = scmp.lt.s32.totalorder %s8, 3
    %p96 = pnand %p94, %p95
    %p97 = pneg %p96
    // Predicated region
    $region9: #{tpu_custom_call.1} parent=5 // pred_check
      _
    $region10: #{tpu_custom_call.1} parent=5 // pred_check_branch
      %99 = sbr.rel (%p96) target = $region12
    $region11: #{tpu_custom_call.1} parent=5 // pred_region
      %s100 = ssub.s32 %s8, 1
    $region12: #{tpu_custom_call.1} parent=5 // pred_fallthru
      _
    %p101 = scmp.lt.s32.totalorder %s8, 2
    // Predicated region
    $region13: #{tpu_custom_call.1} parent=5 // pred_check
      %p102 = pneg %p101
    $region14: #{tpu_custom_call.1} parent=5 // pred_check_branch
      %104 = sbr.rel (%p102) target = $region16
    $region15: #{tpu_custom_call.1} parent=5 // pred_region
      // Predicated region
      $region17: #{tpu_custom_call.1} parent=15 // pred_check
        %p105 = pneg %p28
      $region18: #{tpu_custom_call.1} parent=15 // pred_check_branch
        %107 = sbr.rel (%p105) target = $region20
      $region19: #{tpu_custom_call.1} parent=15 // pred_region
        %p108 = scmp.lt.s32.totalorder %s8, 1
        %s109 = scalar_select %p108, %s8, 1
        %s110 = smul.addr %s109, 8
        %s111 = scalar_lea.vmem %s0, %s110
      $region20: #{tpu_custom_call.1} parent=15 // pred_fallthru
        _
      // Predicated region
      $region21: #{tpu_custom_call.1} parent=15 // pred_check
        %p112 = pneg %p54
      $region22: #{tpu_custom_call.1} parent=15 // pred_check_branch
        %114 = sbr.rel (%p112) target = $region24
      $region23: #{tpu_custom_call.1} parent=15 // pred_region
        %p115 = scmp.lt.s32.totalorder %s8, 1
        %s116 = scalar_select %p115, %s8, 1
        %s117 = smul.addr %s116, 8
        %s118 = scalar_lea.vmem %s1, %s117
      $region24: #{tpu_custom_call.1} parent=15 // pred_fallthru
        _
    $region16: #{tpu_custom_call.1} parent=5 // pred_fallthru
      _
    %p119 = scmp.le.s32.totalorder 1, %s8
    %p120 = scmp.lt.s32.totalorder %s8, 3
    %p121 = pnand %p119, %p120
    %p122 = pneg %p121
    // Predicated region
    $region25: #{tpu_custom_call.1} parent=5 // pred_check
      _
    $region26: #{tpu_custom_call.1} parent=5 // pred_check_branch
      %124 = sbr.rel (%p121) target = $region28
    $region27: #{tpu_custom_call.1} parent=5 // pred_region
      %s125 = ssub.s32 %s8, 1
      %p126 = scmp.lt.s32.totalorder %s13, 1
      %s127 = scalar_select %p126, %s13, 1
      %s128 = smul.addr %s127, 8
      %s129 = scalar_lea.vmem %s0, %s128
      %p130 = pneg %p34
      %p131 = pneg %p31
      %p132 = scmp.lt.s32.totalorder %s13, 1
      %s133 = scalar_select %p132, %s13, 1
      %s134 = smul.addr %s133, 8
      %s135 = scalar_lea.vmem %s1, %s134
      %p136 = pneg %p60
      %p137 = pneg %p57
      %p138 = pneg %p86
      %p139 = pneg %p83
      %p140 = scmp.lt.s32.totalorder %s13, 1
      %s141 = scalar_select %p140, %s13, 1
      %s142 = smul.addr %s141, 8
      %s143 = scalar_lea.vmem %s2, %s142
      %p144 = scmp.lt.s32.totalorder %s13, 1
      %s145 = scalar_select %p144, %s13, 1
      %s146 = smul.addr %s145, 8
      %s147 = scalar_lea.vmem %s0, %s146
      %p148 = scmp.lt.s32.totalorder %s13, 1
      %s149 = scalar_select %p148, %s13, 1
      %s150 = smul.addr %s149, 8
      %s151 = scalar_lea.vmem %s1, %s150
      %p152 = scmp.lt.s32.totalorder %s13, 1
      %s153 = scalar_select %p152, %s13, 1
      %s154 = smul.addr %s153, 8
      %s155 = scalar_lea.vmem %s2, %s154
      %v156 = vld [vmem:[%s151] sm:$0xff]
      %v157 = vld [vmem:[%s147] sm:$0xff]
      %vm158 = vcmask 261120
      %v159 = vsel %vm158, %v156, -inf
      %160 = vmax.xlane.f32.xlu0 %v159
      %v161 = vpop.xlane.xlu0 %160
      %v162 = vsub.f32 %v156, %v161
      %v163 = vmul.f32 %v162, 1.442695
      %v164 = vpow.pop %v163
      %v165 = vsel %vm158, %v164, 0.0
      %166 = vadd.xlane.f32.xlu0 %v165
      %v167 = vpop.xlane.xlu0 %166
      %v168 = vlog2.pop %v167
      %v169 = vmul.f32 %v168, 0.6931472
      %v170 = vlaneseq
      %v171 = vand.u32 %v170, 127
      %172 = vset.pattern.permute.xlu0 0
      %173 = vperm.xlu0 %172, %v157
      %v174 = vpop.permute.xlu0 %173
      %vm175 = vcmp.eq.s32.totalorder %v171, %v174
      %v176 = vsel %vm175, %v162, 0.0
      %v177 = vsel %vm158, %v176, 0.0
      %178 = vadd.xlane.f32.xlu0 %v177
      %v179 = vpop.xlane.xlu0 %178
      %v180 = vsub.f32 %v179, %v169
      %v181 = vsel %vm158, %v162, 0.0
      %182 = vadd.xlane.f32.xlu0 %v181
      %v183 = vpop.xlane.xlu0 %182
      %v184 = vmul.f32 %v169, 32.0
      %v185 = vsub.f32 %v183, %v184
      %vm186 = vcmp.eq.s32.totalorder %v157, 7
      %v187 = vsel %vm186, 0.9, 1.0
      %v188 = vsel %vm186, 0.0032258064, 0.0
      %v189 = vsel %vm186, -0.6684817, 0.0
      %v190 = vmul.f32 %v187, %v180
      %v191 = vsub.f32 %v185, %v180
      %v192 = vmul.f32 %v188, %v191
      %v193 = vadd.f32 %v190, %v192
      %v194 = vsub.f32 %v189, %v193
      %vm195 = vcmp.ne.s32.totalorder %v157, 4294967196
      %v196 = vsel %vm195, %v194, 0.0
      %vm197 = vcmask 7168
      %198 = vst.msk [vmem:[%s155] sm:$0xff] %vm197, %v196
      %p199 = scmp.lt.s32.totalorder %s13, 1
      %s200 = scalar_select %p199, %s13, 1
      %s201 = smul.addr %s200, 8
      %s202 = scalar_lea.vmem %s2, %s201
      // Predicated region
      $region29: #{tpu_custom_call.1} parent=27 // pred_check
        %p203 = pneg %p83
      $region30: #{tpu_custom_call.1} parent=27 // pred_check_branch
        %205 = sbr.rel (%p203) target = $region32
      $region31: #{tpu_custom_call.1} parent=27 // pred_region
        _
      $region32: #{tpu_custom_call.1} parent=27 // pred_fallthru
        _
    $region28: #{tpu_custom_call.1} parent=5 // pred_fallthru
      _
    %p206 = scmp.le.s32.totalorder 2, %s8
    // Predicated region
    $region33: #{tpu_custom_call.1} parent=5 // pred_check
      %p207 = pneg %p206
    $region34: #{tpu_custom_call.1} parent=5 // pred_check_branch
      %209 = sbr.rel (%p207) target = $region36
    $region35: #{tpu_custom_call.1} parent=5 // pred_region
      %s210 = ssub.s32 %s8, 2
      // Predicated region
      $region37: #{tpu_custom_call.1} parent=35 // pred_check
        %p211 = pneg %p89
      $region38: #{tpu_custom_call.1} parent=35 // pred_check_branch
        %213 = sbr.rel (%p211) target = $region40
      $region39: #{tpu_custom_call.1} parent=35 // pred_region
        %p214 = scmp.lt.s32.totalorder %s14, 1
        %s215 = scalar_select %p214, %s14, 1
        %s216 = smul.addr %s215, 8
        %s217 = scalar_lea.vmem %s2, %s216
      $region40: #{tpu_custom_call.1} parent=35 // pred_fallthru
        _
    $region36: #{tpu_custom_call.1} parent=5 // pred_fallthru
      _
  $region6: #{tpu_custom_call.1} parent=0 // loop_footer
    %s12 = sadd.s32 1, %s8
  $region7: #{tpu_custom_call.1} parent=0 // loop_footer_branch
    %7 = sbr.rel target = $region3
  $region8: #{tpu_custom_call.1} parent=0 // loop_exit
    _

</llo_original>
